<compile_context>
chip_gen: v5e
topology: v5e:2x2
jax: 0.10.0
libtpu: 0.0.40
codegen_flags: <defaults>
</compile_context>

<pallas_src>
import math
from functools import partial

import jax
import jax.numpy as jnp
from jax import lax
from jax.experimental import pallas as pl
from jax.experimental.pallas import tpu as pltpu


# ----------------------------------------------------------------------------
# Pallas kernel: tiled matmul, fused scale/shift (+ residual add) (+ ReLU)
# ----------------------------------------------------------------------------
def _mm_kernel(*refs, relu, has_add):
    if has_add:
        a_ref, b_ref, s_ref, t_ref, r_ref, o_ref, acc_ref = refs
    else:
        a_ref, b_ref, s_ref, t_ref, o_ref, acc_ref = refs
        r_ref = None
    k = pl.program_id(2)

    @pl.when(k == 0)
    def _():
        acc_ref[...] = jnp.zeros_like(acc_ref)

    acc_ref[...] += jnp.dot(a_ref[...], b_ref[...],
                            preferred_element_type=jnp.float32)

    @pl.when(k == pl.num_programs(2) - 1)
    def _():
        y = acc_ref[...] * s_ref[...] + t_ref[...]
        if has_add:
            y = y + r_ref[...].astype(jnp.float32)
        if relu:
            y = jnp.maximum(y, 0.0)
        o_ref[...] = y.astype(o_ref.dtype)


def _round_up(x, m):
    return (x + m - 1) // m * m


def _pick_tile(dim, unit, max_tile):
    """Largest multiple of `unit` that divides `dim` and is <= max_tile."""
    best = unit
    t = unit
    while t <= min(dim, max_tile):
        if dim % t == 0:
            best = t
        t += unit
    return best


@partial(jax.jit, static_argnames=("relu", "out_dtype"))
def _padded_matmul(a, b, scale, shift, residual, *, relu, out_dtype):
    """a: (Mp, Kp) bf16, b: (Kp, Np) bf16, scale/shift: (1, Np) f32,
    residual: (Mp, Np) or None.  Returns (Mp, Np) out_dtype."""
    Mp, Kp = a.shape
    _, Np = b.shape

    tm = _pick_tile(Mp, 16, 128)
    tn = _pick_tile(Np, 128, 256)
    tk = _pick_tile(Kp, 128, 2048)
    # keep >=2 parallel grid steps when possible (v7x has 2 TensorCores)
    if Mp // tm == 1 and Np // tn == 1:
        if Np // 128 >= 2:
            tn = _pick_tile(Np, 128, Np // 2)
        elif Mp // 16 >= 2:
            tm = _pick_tile(Mp, 16, Mp // 2)

    grid = (Mp // tm, Np // tn, Kp // tk)
    has_add = residual is not None

    in_specs = [
        pl.BlockSpec((tm, tk), lambda i, j, k: (i, k)),
        pl.BlockSpec((tk, tn), lambda i, j, k: (k, j)),
        pl.BlockSpec((1, tn), lambda i, j, k: (0, j)),
        pl.BlockSpec((1, tn), lambda i, j, k: (0, j)),
    ]
    args = [a, b, scale, shift]
    if has_add:
        in_specs.append(pl.BlockSpec((tm, tn), lambda i, j, k: (i, j)))
        args.append(residual)

    return pl.pallas_call(
        partial(_mm_kernel, relu=relu, has_add=has_add),
        out_shape=jax.ShapeDtypeStruct((Mp, Np), out_dtype),
        grid_spec=pltpu.PrefetchScalarGridSpec(
            num_scalar_prefetch=0,
            grid=grid,
            in_specs=in_specs,
            out_specs=pl.BlockSpec((tm, tn), lambda i, j, k: (i, j)),
            scratch_shapes=[pltpu.VMEM((tm, tn), jnp.float32)],
        ),
        compiler_params=pltpu.CompilerParams(
            dimension_semantics=("parallel", "parallel", "arbitrary"),
            vmem_limit_bytes=32 * 1024 * 1024),
    )(*args)


# ----------------------------------------------------------------------------
# Weight pre-packing (done once, at parameter-construction time)
# ----------------------------------------------------------------------------
def pack_conv(w, bias=None, bn=None):
    """w: torch layout (Cout, Cin, kh, kw) f32 -> padded bf16 (Kp, Np) matrix
    plus folded f32 (scale, shift) rows."""
    cout, cin, kh, kw = w.shape
    K = kh * kw * cin
    Kp, Np = _round_up(K, 128), _round_up(cout, 128)

    B = jnp.transpose(w, (2, 3, 1, 0)).reshape(K, cout)          # tap-major, matches im2col
    B = jnp.pad(B, ((0, Kp - K), (0, Np - cout))).astype(jnp.bfloat16)

    if bn is not None:
        scale = bn["gamma"] / jnp.sqrt(bn["var"] + 1e-5)
        shift = bn["beta"] - bn["mean"] * scale
        if bias is not None:
            shift = shift + bias * scale
    else:
        scale = jnp.ones((cout,), jnp.float32)
        shift = bias if bias is not None else jnp.zeros((cout,), jnp.float32)
    scale = jnp.pad(scale.reshape(1, -1).astype(jnp.float32), ((0, 0), (0, Np - cout)))
    shift = jnp.pad(shift.reshape(1, -1).astype(jnp.float32), ((0, 0), (0, Np - cout)))
    return dict(B=B, scale=scale, shift=shift, kh=kh, kw=kw, cin=cin, cout=cout)


# ----------------------------------------------------------------------------
# Conv2d (NHWC) via im2col + Pallas matmul
# ----------------------------------------------------------------------------
def conv2d(x, pk, stride=1, padding=0, relu=False, residual=None,
           out_dtype=jnp.bfloat16):
    """x: (N, H, W, Cin) bf16; pk: pre-packed conv params."""
    N, H, W, Cin = x.shape
    kh, kw, Cout = pk["kh"], pk["kw"], pk["cout"]
    assert Cin == pk["cin"], (Cin, pk["cin"])
    Ho = (H + 2 * padding - kh) // stride + 1
    Wo = (W + 2 * padding - kw) // stride + 1

    if kh == 1 and kw == 1 and stride == 1 and padding == 0:
        A = x.reshape(N * Ho * Wo, Cin)
    else:
        xp = jnp.pad(x, ((0, 0), (padding, padding), (padding, padding), (0, 0)))
        pats = [xp[:, i:i + (Ho - 1) * stride + 1:stride,
                   j:j + (Wo - 1) * stride + 1:stride, :]
                for i in range(kh) for j in range(kw)]
        patches = jnp.stack(pats, axis=3)                 # (N, Ho, Wo, kh*kw, Cin)
        A = patches.reshape(N * Ho * Wo, kh * kw * Cin)

    M, K = A.shape
    Kp, Np = pk["B"].shape
    Mp = _round_up(max(M, 16), 16)
    A = jnp.pad(A.astype(jnp.bfloat16), ((0, Mp - M), (0, Kp - K)))

    res = None
    if residual is not None:
        r = residual.reshape(M, Cout).astype(jnp.bfloat16)
        res = jnp.pad(r, ((0, Mp - M), (0, Np - Cout)))

    out = _padded_matmul(A, pk["B"], pk["scale"], pk["shift"], res,
                         relu=relu, out_dtype=out_dtype)
    return out[:M, :Cout].reshape(N, Ho, Wo, Cout)


# ----------------------------------------------------------------------------
# JAX glue ops: maxpool, adaptive avg pool, bilinear interpolation
# ----------------------------------------------------------------------------
def maxpool_3x3_s2_p1(x):
    neg_inf = jnp.array(-jnp.inf, dtype=x.dtype)
    return lax.reduce_window(x, neg_inf, lax.max,
                             (1, 3, 3, 1), (1, 2, 2, 1),
                             [(0, 0), (1, 1), (1, 1), (0, 0)])


def adaptive_avg_pool2d(x, out_size):
    N, H, W, C = x.shape
    xf = x.astype(jnp.float32)
    rows = []
    for i in range(out_size):
        hs, he = (i * H) // out_size, math.ceil((i + 1) * H / out_size)
        cols = []
        for j in range(out_size):
            ws, we = (j * W) // out_size, math.ceil((j + 1) * W / out_size)
            cols.append(jnp.mean(xf[:, hs:he, ws:we, :], axis=(1, 2)))
        rows.append(jnp.stack(cols, axis=1))
    return jnp.stack(rows, axis=1).astype(x.dtype)         # (N, out, out, C)


def _interp_1d(in_size, out_size, align_corners):
    if align_corners:
        if out_size == 1:
            src = jnp.zeros((out_size,), jnp.float32)
        else:
            src = jnp.arange(out_size, dtype=jnp.float32) * \
                ((in_size - 1) / (out_size - 1))
    else:
        scale = in_size / out_size
        src = (jnp.arange(out_size, dtype=jnp.float32) + 0.5) * scale - 0.5
        src = jnp.maximum(src, 0.0)
    i0 = jnp.minimum(jnp.floor(src).astype(jnp.int32), in_size - 1)
    i1 = jnp.minimum(i0 + 1, in_size - 1)
    w = src - i0.astype(jnp.float32)
    return i0, i1, w


def interpolate_bilinear(x, out_h, out_w, align_corners):
    h0, h1, wh = _interp_1d(x.shape[1], out_h, align_corners)
    w0, w1, ww = _interp_1d(x.shape[2], out_w, align_corners)
    r0, r1 = jnp.take(x, h0, axis=1), jnp.take(x, h1, axis=1)
    xr = r0 * (1.0 - wh)[None, :, None, None] + r1 * wh[None, :, None, None]
    c0, c1 = jnp.take(xr, w0, axis=2), jnp.take(xr, w1, axis=2)
    y = c0 * (1.0 - ww)[None, None, :, None] + c1 * ww[None, None, :, None]
    return y.astype(x.dtype)


def up_and_add(x, y):
    return interpolate_bilinear(x, y.shape[1], y.shape[2], True) + y


# ----------------------------------------------------------------------------
# Parameter construction (deterministic, PRNGKey(0)), pre-packed for Pallas
# ----------------------------------------------------------------------------
def _conv_w(key, cout, cin, k):
    fan_in = cin * k * k
    return jax.random.normal(key, (cout, cin, k, k), jnp.float32) / math.sqrt(fan_in)


def _conv_b(key, cout):
    return jax.random.normal(key, (cout,), jnp.float32) * 0.01


def _bn(c):
    return dict(gamma=jnp.ones((c,), jnp.float32), beta=jnp.zeros((c,), jnp.float32),
                mean=jnp.zeros((c,), jnp.float32), var=jnp.ones((c,), jnp.float32))


def make_params(num_classes=5, fpn_out=64):
    keys = iter(jax.random.split(jax.random.PRNGKey(0), 256))
    feature_channels = [64, 128, 256, 512]
    P = {}

    # --- ResNet34 backbone ---
    P["conv1"] = pack_conv(_conv_w(next(keys), 64, 3, 7), bn=_bn(64))

    def make_layer(cin, cout, blocks, stride):
        layer = []
        for b in range(blocks):
            s = stride if b == 0 else 1
            in_c = cin if b == 0 else cout
            blk = dict(
                conv1=pack_conv(_conv_w(next(keys), cout, in_c, 3), bn=_bn(cout)),
                conv2=pack_conv(_conv_w(next(keys), cout, cout, 3), bn=_bn(cout)),
                stride=s, downsample=None)
            if s != 1 or in_c != cout:
                blk["downsample"] = pack_conv(_conv_w(next(keys), cout, in_c, 1),
                                              bn=_bn(cout))
            layer.append(blk)
        return layer

    P["layer1"] = make_layer(64, 64, 3, 1)
    P["layer2"] = make_layer(64, 128, 4, 2)
    P["layer3"] = make_layer(128, 256, 6, 2)
    P["layer4"] = make_layer(256, 512, 3, 2)

    # --- PSPModule (in_channels=512, bins [1,2,4,6], out = 128 per stage) ---
    psp_in, psp_out = 512, 512 // 4
    P["psp_stages"] = [pack_conv(_conv_w(next(keys), psp_out, psp_in, 1),
                                 bn=_bn(psp_out)) for _ in range(4)]
    P["psp_bottleneck"] = pack_conv(
        _conv_w(next(keys), psp_in, psp_in + psp_out * 4, 3), bn=_bn(psp_in))

    # --- FPN_fuse (feature_channels, fpn_out=64) ---
    P["fpn_conv1x1"] = [pack_conv(_conv_w(next(keys), fpn_out, ft, 1),
                                  bias=_conv_b(next(keys), fpn_out))
                        for ft in feature_channels[1:]]
    # NOTE: PyTorch code builds [conv]*3 -> the SAME module (shared weights).
    P["fpn_smooth"] = pack_conv(_conv_w(next(keys), fpn_out, fpn_out, 3),
                                bias=_conv_b(next(keys), fpn_out))
    P["fpn_fusion"] = pack_conv(
        _conv_w(next(keys), fpn_out, len(feature_channels) * fpn_out, 3),
        bn=_bn(fpn_out))

    # --- head ---
    P["head"] = pack_conv(_conv_w(next(keys), num_classes, fpn_out, 3),
                          bias=_conv_b(next(keys), num_classes))
    return P


# ----------------------------------------------------------------------------
# Forward pass (NHWC, bf16 activations internally)
# ----------------------------------------------------------------------------
def basic_block(x, p):
    out = conv2d(x, p["conv1"], stride=p["stride"], padding=1, relu=True)
    if p["downsample"] is not None:
        identity = conv2d(x, p["downsample"], stride=p["stride"], padding=0, relu=False)
    else:
        identity = x
    # second conv: BN + residual add + ReLU all fused into the kernel epilogue
    return conv2d(out, p["conv2"], stride=1, padding=1, relu=True, residual=identity)


def backbone_forward(x, P):
    x = conv2d(x, P["conv1"], stride=2, padding=3, relu=True)
    x = maxpool_3x3_s2_p1(x)
    feats = []
    for name in ("layer1", "layer2", "layer3", "layer4"):
        for blk in P[name]:
            x = basic_block(x, blk)
        feats.append(x)
    return feats  # [c2, c3, c4, c5]


def psp_forward(feat, P):
    h, w = feat.shape[1], feat.shape[2]
    pyramids = [feat]
    for bin_sz, stage in zip([1, 2, 4, 6], P["psp_stages"]):
        p = adaptive_avg_pool2d(feat, bin_sz)
        p = conv2d(p, stage, padding=0, relu=True)
        p = interpolate_bilinear(p, h, w, True)
        pyramids.append(p)
    x = jnp.concatenate(pyramids, axis=-1)
    x = conv2d(x, P["psp_bottleneck"], padding=1, relu=True)
    # Dropout2d(0.1): identity in eval mode
    return x


def fpn_forward(features, P):
    feats = list(features)
    for idx in range(1, 4):
        feats[idx] = conv2d(feats[idx], P["fpn_conv1x1"][idx - 1], padding=0, relu=False)
    Pl = [up_and_add(feats[i], feats[i - 1]) for i in reversed(range(1, 4))]
    Pl = [conv2d(x, P["fpn_smooth"], padding=1, relu=False) for x in Pl]
    Pl = list(reversed(Pl))
    Pl.append(feats[-1])
    H, W = Pl[0].shape[1], Pl[0].shape[2]
    Pl[1:] = [interpolate_bilinear(f, H, W, True) for f in Pl[1:]]
    x = jnp.concatenate(Pl, axis=-1)
    x = conv2d(x, P["fpn_fusion"], padding=1, relu=True)
    return x


def upernet_forward(x_nchw, P):
    # layout: accept NCHW (PyTorch), compute in NHWC bf16, return NCHW f32.
    x = jnp.transpose(x_nchw, (0, 2, 3, 1)).astype(jnp.bfloat16)
    out_h, out_w = x_nchw.shape[2] // 8, x_nchw.shape[3] // 8
    features = backbone_forward(x, P)
    features[-1] = psp_forward(features[-1], P)
    x = fpn_forward(features, P)
    x = conv2d(x, P["head"], padding=1, relu=False, out_dtype=jnp.float32)
    x = interpolate_bilinear(x, out_h, out_w, align_corners=False)
    return jnp.transpose(x, (0, 3, 1, 2))


# ----------------------------------------------------------------------------
if __name__ == "__main__":
    num_classes = 5
    params = make_params(num_classes=num_classes, fpn_out=64)

    key = jax.random.PRNGKey(0)
    x = jax.random.normal(key, (1, 3, 64, 64), jnp.float32)   # NCHW like PyTorch

    out = upernet_forward(x, params)
    out = jax.block_until_ready(out)

    assert out.shape == (1, num_classes, 8, 8), out.shape
    assert bool(jnp.all(jnp.isfinite(out)))
    print("KERNEL_OK")
</pallas_src>

<mosaic_0001>
module attributes {stable_mosaic.version = 11 : i64} {
  func.func @_mm_kernel(%arg0: i32, %arg1: i32, %arg2: i32, %arg3: memref<128x256xbf16, #tpu.memory_space<vmem>>, %arg4: memref<256x128xbf16, #tpu.memory_space<vmem>>, %arg5: memref<1x128xf32, #tpu.memory_space<vmem>>, %arg6: memref<1x128xf32, #tpu.memory_space<vmem>>, %arg7: memref<128x128xbf16, #tpu.memory_space<vmem>>, %arg8: memref<128x128xf32, #tpu.memory_space<vmem>>) attributes {dimension_semantics = [#tpu.dimension_semantics<parallel>, #tpu.dimension_semantics<parallel>, #tpu.dimension_semantics<arbitrary>], iteration_bounds = array<i64: 8, 1, 1>, scalar_prefetch = 0 : i64, scratch_operands = 1 : i64, tpu.core_type = #tpu.core_type<tc>, window_params = [{transform_indices = @transform_0, window_bounds = array<i64: 128, 256>}, {transform_indices = @transform_1, window_bounds = array<i64: 256, 128>}, {transform_indices = @transform_2, window_bounds = array<i64: 1, 128>}, {transform_indices = @transform_3, window_bounds = array<i64: 1, 128>}, {transform_indices = @transform_4, window_bounds = array<i64: 128, 128>}]} {
    %c0_i32 = arith.constant 0 : i32
    %0 = arith.cmpi eq, %arg2, %c0_i32 : i32
    %1 = arith.extui %0 : i1 to i32
    %c0_i32_0 = arith.constant 0 : i32
    %2 = arith.cmpi ne, %1, %c0_i32_0 : i32
    scf.if %2 {
      %cst_10 = arith.constant 0.000000e+00 : f32
      %12 = vector.broadcast %cst_10 : f32 to vector<128x128xf32>
      %c0_11 = arith.constant 0 : index
      %c0_12 = arith.constant 0 : index
      %13 = vector.load %arg8[%c0_11, %c0_12] : memref<128x128xf32, #tpu.memory_space<vmem>>, vector<128x128xf32>
      tpu.vector_store %arg8[%c0_11, %c0_12], %12 {strides = array<i32>} : memref<128x128xf32, #tpu.memory_space<vmem>>, vector<128x128xf32>,
    } else {
    }
    %c0 = arith.constant 0 : index
    %c0_1 = arith.constant 0 : index
    %3 = vector.load %arg8[%c0, %c0_1] : memref<128x128xf32, #tpu.memory_space<vmem>>, vector<128x128xf32>
    %c0_2 = arith.constant 0 : index
    %c0_3 = arith.constant 0 : index
    %4 = vector.load %arg3[%c0_2, %c0_3] : memref<128x256xbf16, #tpu.memory_space<vmem>>, vector<128x256xbf16>
    %c0_4 = arith.constant 0 : index
    %c0_5 = arith.constant 0 : index
    %5 = vector.load %arg4[%c0_4, %c0_5] : memref<256x128xbf16, #tpu.memory_space<vmem>>, vector<256x128xbf16>
    %cst = arith.constant dense<0.000000e+00> : vector<128x128xf32>
    %6 = tpu.matmul %4, %5, %cst {dimension_numbers = #tpu.dot_dimension_numbers<[1], [0], [0], [1], [0, 0, 1, 1], [], []>} : vector<128x256xbf16>, vector<256x128xbf16>, vector<128x128xf32> -> vector<128x128xf32>
    %7 = arith.addf %3, %6 : vector<128x128xf32>
    %c0_6 = arith.constant 0 : index
    %c0_7 = arith.constant 0 : index
    %8 = vector.load %arg8[%c0_6, %c0_7] : memref<128x128xf32, #tpu.memory_space<vmem>>, vector<128x128xf32>
    tpu.vector_store %arg8[%c0_6, %c0_7], %7 {strides = array<i32>} : memref<128x128xf32, #tpu.memory_space<vmem>>, vector<128x128xf32>,
    %c0_i32_8 = arith.constant 0 : i32
    %9 = arith.cmpi eq, %arg2, %c0_i32_8 : i32
    %10 = arith.extui %9 : i1 to i32
    %c0_i32_9 = arith.constant 0 : i32
    %11 = arith.cmpi ne, %10, %c0_i32_9 : i32
    scf.if %11 {
      %c0_10 = arith.constant 0 : index
      %c0_11 = arith.constant 0 : index
      %12 = vector.load %arg8[%c0_10, %c0_11] : memref<128x128xf32, #tpu.memory_space<vmem>>, vector<128x128xf32>
      %c0_12 = arith.constant 0 : index
      %c0_13 = arith.constant 0 : index
      %13 = vector.load %arg5[%c0_12, %c0_13] : memref<1x128xf32, #tpu.memory_space<vmem>>, vector<1x128xf32>
      %14 = vector.broadcast %13 : vector<1x128xf32> to vector<128x128xf32>
      %15 = arith.mulf %12, %14 : vector<128x128xf32>
      %c0_14 = arith.constant 0 : index
      %c0_15 = arith.constant 0 : index
      %16 = vector.load %arg6[%c0_14, %c0_15] : memref<1x128xf32, #tpu.memory_space<vmem>>, vector<1x128xf32>
      %17 = vector.broadcast %16 : vector<1x128xf32> to vector<128x128xf32>
      %18 = arith.addf %15, %17 : vector<128x128xf32>
      %cst_16 = arith.constant 0.000000e+00 : f32
      %19 = vector.broadcast %cst_16 : f32 to vector<128x128xf32>
      %20 = arith.maximumf %18, %19 : vector<128x128xf32>
      %21 = arith.truncf %20 : vector<128x128xf32> to vector<128x128xbf16>
      %c0_17 = arith.constant 0 : index
      %c0_18 = arith.constant 0 : index
      %22 = vector.load %arg7[%c0_17, %c0_18] : memref<128x128xbf16, #tpu.memory_space<vmem>>, vector<128x128xbf16>
      tpu.vector_store %arg7[%c0_17, %c0_18], %21 {strides = array<i32>} : memref<128x128xbf16, #tpu.memory_space<vmem>>, vector<128x128xbf16>,
    } else {
    }
    return
  }
  func.func @transform_0(%arg0: i32, %arg1: i32, %arg2: i32) -> (i32, i32) {
    %c0_i32 = arith.constant 0 : i32
    return %arg0, %arg2 : i32, i32
  }
  func.func @transform_1(%arg0: i32, %arg1: i32, %arg2: i32) -> (i32, i32) {
    %c0_i32 = arith.constant 0 : i32
    return %arg2, %arg1 : i32, i32
  }
  func.func @transform_2(%arg0: i32, %arg1: i32, %arg2: i32) -> (i32, i32) {
    %c0_i32 = arith.constant 0 : i32
    %c0_i32_0 = arith.constant 0 : i32
    return %c0_i32, %arg1 : i32, i32
  }
  func.func @transform_3(%arg0: i32, %arg1: i32, %arg2: i32) -> (i32, i32) {
    %c0_i32 = arith.constant 0 : i32
    %c0_i32_0 = arith.constant 0 : i32
    return %c0_i32, %arg1 : i32, i32
  }
  func.func @transform_4(%arg0: i32, %arg1: i32, %arg2: i32) -> (i32, i32) {
    %c0_i32 = arith.constant 0 : i32
    return %arg0, %arg1 : i32, i32
  }
}

</mosaic_0001>

<llo_original>
// kernel: _padded_matmul.1
$region0: #{_padded_matmul.1}
  #allocation0 [shape = 'u32[]', space=smem, size = 0x4, offset = 0x4, fixed_abs, tag = 'smem constant byte address 0x4 - core index']
  #allocation1 [shape = 'u32[72,128]{1,0:T(1,128)}', space=vmem, size = 0x9000, scoped, tag = 'internal scratch']
  #allocation2 [shape = 'f32[128,128]{1,0:T(8,128)}', space=vmem, size = 0x10000, scoped, tag = 'scratch operand']
  %s0 = inlined_call_operand.hbm [shape: bf16[1024,256], index: 0, kind: input, shape index: {}]
  %s1 = inlined_call_operand.hbm [shape: bf16[256,128], index: 1, kind: input, shape index: {}]
  %s2 = inlined_call_operand.vmem [shape: f32[1,128], index: 2, kind: input, shape index: {}]
  %s3 = inlined_call_operand.vmem [shape: f32[1,128], index: 3, kind: input, shape index: {}]
  %s4 = inlined_call_operand.hbm [shape: bf16[1024,128], index: 4, kind: output, shape index: {}]
  %s5 = sld [smem:[#allocation0]]
  $region65: #{_padded_matmul.1} parent=0
    _
  %s7 = ssub.s32 1, %s5
  %s8 = scalar_select 0, %s7, %s5
  $region1: #{_padded_matmul.1} parent=0
    #allocation3 [shape = 'u8[131072]{0}', space=vmem, size = 0x20000, scoped, tag = 'input window, operand 0']
    #allocation4 [shape = 's32[2]{0}', space=sflag, size = 0x8, scoped, tag = 'scoped memory for _padded_matmul.1']
    #allocation5 [shape = 's32[2]{0}', space=sflag, size = 0x8, scoped, tag = 'scoped memory for _padded_matmul.1']
    #allocation6 [shape = 'u8[65536]{0}', space=vmem, size = 0x10000, scoped, tag = 'input window, operand 1, single buffered']
    #allocation7 [shape = 's32[1]{0}', space=sflag, size = 0x4, scoped, tag = 'scoped memory for _padded_matmul.1']
    #allocation8 [shape = 'u8[65536]{0}', space=vmem, size = 0x10000, scoped, tag = 'output window, operand 0']
    %9 = vsyncpa [#allocation4], 0
    %s10 = scalar_lea.sflag [#allocation4], 1
    %11 = vsyncpa %s10, 0
    %12 = vsyncpa [#allocation7], 0
    %13 = vsyncpa [#allocation5], 0
    %s14 = scalar_lea.sflag [#allocation5], 1
    %15 = vsyncpa %s14, 0
    loop: start=0, step=1, limit=10
    $region2: #{_padded_matmul.1} parent=1 // loop_pre_header
      _
    $region3: #{_padded_matmul.1} parent=1 // loop_header
      %s17 = sphi 0, %s21
      %p18 = scmp.ge.s32.totalorder %s17, 10
      %s24 = sphi 0, %s43
      %s25 = sphi 0, %s39
      %s26 = sphi 0, %s35
      %s27 = sphi 0, %s24
      %s28 = sphi 0, %s25
      %s29 = sphi 0, %s26
      %s30 = sphi 0, %s27
      %s31 = sphi 0, %s28
      %s32 = sphi 0, %s29
      %s48 = sphi 0, %s50
      %s51 = sphi 0, %s48
      %s52 = sphi 0, %s51
      %s68 = sphi 0, %s52
      %s76 = sphi 0, %s78
      %s79 = sphi 0, %s76
      %s80 = sphi 0, %s79
      %s96 = sphi 0, %s80
      %s102 = sphi 0, %s104
      %s105 = sphi 0, %s102
      %s106 = sphi 0, %s105
      %s122 = sphi 0, %s106
      %s128 = sphi 0, %s130
      %s131 = sphi 0, %s128
      %s132 = sphi 0, %s131
      %s148 = sphi 0, %s132
      %s156 = sphi 0, %s158
      %s159 = sphi 0, %s156
      %s160 = sphi 0, %s159
      %s176 = sphi 0, %s160
    $region4: #{_padded_matmul.1} parent=1 // loop_header_branch
      %20 = sbr.rel (%p18) target = $region8
    $region5: #{_padded_matmul.1} parent=1 // loop_body
      %s22 = ssub.s32 %s17, 1
      %s23 = ssub.s32 %s17, 2
      %s33 = sadd.s32 1, %s26
      %p34 = scmp.ge.s32.totalorder %s33, 1
      %s35 = scalar_select %p34, 0, %s33
      %s36 = sadd.s32 1, %s25
      %s37 = scalar_select %p34, %s36, %s25
      %p38 = scmp.ge.s32.totalorder %s37, 1
      %s39 = scalar_select %p38, 0, %s37
      %s40 = sadd.s32 1, %s24
      %s41 = scalar_select %p38, %s40, %s24
      %p42 = scmp.ge.s32.totalorder %s41, 8
      %s43 = scalar_select %p42, 0, %s41
      %s44 = ssub.s32 %s24, %s43
      %s45 = ssub.s32 %s26, %s35
      %s46 = sor.u32 %s44, %s45
      %p47 = scmp.eq.s32.totalorder %s46, 0
      %s49 = sadd.s32 %s48, 1
      %s50 = scalar_select %p47, %s48, %s49
      %p53 = pneg %p47
      %p54 = scmp.eq.s32.totalorder %s17, 7
      %p55 = por %p53, %p54
      %p56 = scmp.ne.s32.totalorder %s48, %s51
      %p57 = scmp.eq.s32.totalorder %s17, 0
      %p58 = por %p56, %p57
      %p59 = scmp.ne.s32.totalorder %s48, %s51
      %p60 = scmp.eq.s32.totalorder %s22, 7
      %p61 = por %p59, %p60
      %p62 = scmp.ne.s32.totalorder %s51, %s52
      %p63 = scmp.eq.s32.totalorder %s22, 0
      %p64 = por %p62, %p63
      %p65 = scmp.ne.s32.totalorder %s51, %s52
      %p66 = scmp.eq.s32.totalorder %s23, 7
      %p67 = por %p65, %p66
      %p69 = scmp.ne.s32.totalorder %s52, %s68
      %p70 = scmp.eq.s32.totalorder %s23, 0
      %p71 = por %p69, %p70
      %s72 = ssub.s32 %s26, %s35
      %s73 = ssub.s32 %s25, %s39
      %s74 = sor.u32 %s72, %s73
      %p75 = scmp.eq.s32.totalorder %s74, 0
      %s77 = sadd.s32 %s76, 1
      %s78 = scalar_select %p75, %s76, %s77
      %p81 = pneg %p75
      %p82 = scmp.eq.s32.totalorder %s17, 7
      %p83 = por %p81, %p82
      %p84 = scmp.ne.s32.totalorder %s76, %s79
      %p85 = scmp.eq.s32.totalorder %s17, 0
      %p86 = por %p84, %p85
      %p87 = scmp.ne.s32.totalorder %s76, %s79
      %p88 = scmp.eq.s32.totalorder %s22, 7
      %p89 = por %p87, %p88
      %p90 = scmp.ne.s32.totalorder %s79, %s80
      %p91 = scmp.eq.s32.totalorder %s22, 0
      %p92 = por %p90, %p91
      %p93 = scmp.ne.s32.totalorder %s79, %s80
      %p94 = scmp.eq.s32.totalorder %s23, 7
      %p95 = por %p93, %p94
      %p97 = scmp.ne.s32.totalorder %s80, %s96
      %p98 = scmp.eq.s32.totalorder %s23, 0
      %p99 = por %p97, %p98
      %s100 = ssub.s32 %s25, %s39
      %p101 = scmp.eq.s32.totalorder %s100, 0
      %s103 = sadd.s32 %s102, 1
      %s104 = scalar_select %p101, %s102, %s103
      %p107 = pneg %p101
      %p108 = scmp.eq.s32.totalorder %s17, 7
      %p109 = por %p107, %p108
      %p110 = scmp.ne.s32.totalorder %s102, %s105
      %p111 = scmp.eq.s32.totalorder %s17, 0
      %p112 = por %p110, %p111
      %p113 = scmp.ne.s32.totalorder %s102, %s105
      %p114 = scmp.eq.s32.totalorder %s22, 7
      %p115 = por %p113, %p114
      %p116 = scmp.ne.s32.totalorder %s105, %s106
      %p117 = scmp.eq.s32.totalorder %s22, 0
      %p118 = por %p116, %p117
      %p119 = scmp.ne.s32.totalorder %s105, %s106
      %p120 = scmp.eq.s32.totalorder %s23, 7
      %p121 = por %p119, %p120
      %p123 = scmp.ne.s32.totalorder %s106, %s122
      %p124 = scmp.eq.s32.totalorder %s23, 0
      %p125 = por %p123, %p124
      %s126 = ssub.s32 %s25, %s39
      %p127 = scmp.eq.s32.totalorder %s126, 0
      %s129 = sadd.s32 %s128, 1
      %s130 = scalar_select %p127, %s128, %s129
      %p133 = pneg %p127
      %p134 = scmp.eq.s32.totalorder %s17, 7
      %p135 = por %p133, %p134
      %p136 = scmp.ne.s32.totalorder %s128, %s131
      %p137 = scmp.eq.s32.totalorder %s17, 0
      %p138 = por %p136, %p137
      %p139 = scmp.ne.s32.totalorder %s128, %s131
      %p140 = scmp.eq.s32.totalorder %s22, 7
      %p141 = por %p139, %p140
      %p142 = scmp.ne.s32.totalorder %s131, %s132
      %p143 = scmp.eq.s32.totalorder %s22, 0
      %p144 = por %p142, %p143
      %p145 = scmp.ne.s32.totalorder %s131, %s132
      %p146 = scmp.eq.s32.totalorder %s23, 7
      %p147 = por %p145, %p146
      %p149 = scmp.ne.s32.totalorder %s132, %s148
      %p150 = scmp.eq.s32.totalorder %s23, 0
      %p151 = por %p149, %p150
      %s152 = ssub.s32 %s24, %s43
      %s153 = ssub.s32 %s25, %s39
      %s154 = sor.u32 %s152, %s153
      %p155 = scmp.eq.s32.totalorder %s154, 0
      %s157 = sadd.s32 %s156, 1
      %s158 = scalar_select %p155, %s156, %s157
      %p161 = pneg %p155
      %p162 = scmp.eq.s32.totalorder %s17, 7
      %p163 = por %p161, %p162
      %p164 = scmp.ne.s32.totalorder %s156, %s159
      %p165 = scmp.eq.s32.totalorder %s17, 0
      %p166 = por %p164, %p165
      %p167 = scmp.ne.s32.totalorder %s156, %s159
      %p168 = scmp.eq.s32.totalorder %s22, 7
      %p169 = por %p167, %p168
      %p170 = scmp.ne.s32.totalorder %s159, %s160
      %p171 = scmp.eq.s32.totalorder %s22, 0
      %p172 = por %p170, %p171
      %p173 = scmp.ne.s32.totalorder %s159, %s160
      %p174 = scmp.eq.s32.totalorder %s23, 7
      %p175 = por %p173, %p174
      %p177 = scmp.ne.s32.totalorder %s160, %s176
      %p178 = scmp.eq.s32.totalorder %s23, 0
      %p179 = por %p177, %p178
      %p180 = scmp.le.s32.totalorder 1, %s17
      %p181 = scmp.lt.s32.totalorder %s17, 9
      %p182 = pnand %p180, %p181
      %p183 = pneg %p182
      // Predicated region
      $region9: #{_padded_matmul.1} parent=5 // pred_check
        _
      $region10: #{_padded_matmul.1} parent=5 // pred_check_branch
        %185 = sbr.rel (%p182) target = $region12
      $region11: #{_padded_matmul.1} parent=5 // pred_region
        %s186 = ssub.s32 %s17, 1
        // Predicated region
        $region13: #{_padded_matmul.1} parent=11 // pred_check
          %p187 = pneg %p92
        $region14: #{_padded_matmul.1} parent=11 // pred_check_branch
          %189 = sbr.rel (%p187) target = $region16
        $region15: #{_padded_matmul.1} parent=11 // pred_region
          %s190 = smul.u32 32, %s29
          %192 = vsyncadd [#allocation7], 0
          %s193 = sadd.s32 %s28, %s190
          %s194 = smul.addr %s193, 4
          %s195 = scalar_lea.hbm %s1, %s194
          %s196 = sshll.u32 %s195, 4
          %s197 = int_to_ptr.hbm [resolvable:$true] %s196
          %s198 = sshll.u32 [#allocation6], 4
          %s199 = int_to_ptr.vmem [resolvable:$true] %s198
          %204 = dma.hbm_to_vmem [thread:$0]  %s197, 2048, %s199, [#allocation7], 64, 64, 4
        $region16: #{_padded_matmul.1} parent=11 // pred_fallthru
          _
        // Predicated region
        $region17: #{_padded_matmul.1} parent=11 // pred_check
          %p205 = pneg %p118
        $region18: #{_padded_matmul.1} parent=11 // pred_check_branch
          %207 = sbr.rel (%p205) target = $region20
        $region19: #{_padded_matmul.1} parent=11 // pred_region
          %p208 = scmp.lt.s32.totalorder %s28, 0
          %s209 = scalar_select %p208, %s28, 0
          %s210 = scalar_lea.vmem %s2, %s209
        $region20: #{_padded_matmul.1} parent=11 // pred_fallthru
          _
        // Predicated region
        $region21: #{_padded_matmul.1} parent=11 // pred_check
          %p211 = pneg %p144
        $region22: #{_padded_matmul.1} parent=11 // pred_check_branch
          %213 = sbr.rel (%p211) target = $region24
        $region23: #{_padded_matmul.1} parent=11 // pred_region
          %p214 = scmp.lt.s32.totalorder %s28, 0
          %s215 = scalar_select %p214, %s28, 0
          %s216 = scalar_lea.vmem %s3, %s215
        $region24: #{_padded_matmul.1} parent=11 // pred_fallthru
          _
      $region12: #{_padded_matmul.1} parent=5 // pred_fallthru
        _
      %p217 = scmp.lt.s32.totalorder %s17, 8
      // Predicated region
      $region25: #{_padded_matmul.1} parent=5 // pred_check
        %p218 = pneg %p217
      $region26: #{_padded_matmul.1} parent=5 // pred_check_branch
        %220 = sbr.rel (%p218) target = $region28
      $region27: #{_padded_matmul.1} parent=5 // pred_region
        // Predicated region
        $region29: #{_padded_matmul.1} parent=27 // pred_check
          %p221 = pneg %p58
        $region30: #{_padded_matmul.1} parent=27 // pred_check_branch
          %223 = sbr.rel (%p221) target = $region32
        $region31: #{_padded_matmul.1} parent=27 // pred_region
          %s224 = sand.u32 %s48, 1
          %s225 = scalar_lea.sflag [#allocation4], %s224
          %s226 = sand.u32 %s48, 1
          %s227 = smul.addr %s226, 128
          %s228 = scalar_lea.vmem [#allocation3], %s227
          %s229 = smul.u32 16, %s24
          %s230 = smul.u32 2, %s26
          %232 = vsyncadd %s225, 0
          %s233 = smul.addr %s229, 2
          %s234 = sadd.s32 %s230, %s233
          %s235 = smul.addr %s234, 4
          %s236 = scalar_lea.hbm %s0, %s235
          %s237 = sshll.u32 %s236, 4
          %s238 = int_to_ptr.hbm [resolvable:$true] %s237
          %s239 = sshll.u32 %s228, 4
          %s240 = int_to_ptr.vmem [resolvable:$true] %s239
          %245 = dma.hbm_to_vmem [thread:$0]  %s238, 2048, %s240, %s225, 128, 128, 8
        $region32: #{_padded_matmul.1} parent=27 // pred_fallthru
          _
      $region28: #{_padded_matmul.1} parent=5 // pred_fallthru
        _
      %p246 = scmp.le.s32.totalorder 1, %s17
      %p247 = scmp.lt.s32.totalorder %s17, 9
      %p248 = pnand %p246, %p247
      %p249 = pneg %p248
      // Predicated region
      $region33: #{_padded_matmul.1} parent=5 // pred_check
        _
      $region34: #{_padded_matmul.1} parent=5 // pred_check_branch
        %251 = sbr.rel (%p248) target = $region36
      $region35: #{_padded_matmul.1} parent=5 // pred_region
        %s252 = ssub.s32 %s17, 1
        %s253 = sand.u32 %s51, 1
        %s254 = scalar_lea.sflag [#allocation4], %s253
        %s255 = sand.u32 %s51, 1
        %s256 = smul.addr %s255, 128
        %s257 = scalar_lea.vmem [#allocation3], %s256
        // Predicated region
        $region37: #{_padded_matmul.1} parent=35 // pred_check
          %p258 = pneg %p64
        $region38: #{_padded_matmul.1} parent=35 // pred_check_branch
          %260 = sbr.rel (%p258) target = $region40
        $region39: #{_padded_matmul.1} parent=35 // pred_region
          %262 = dma.done %s254, 2048
        $region40: #{_padded_matmul.1} parent=35 // pred_fallthru
          _
        // Predicated region
        $region41: #{_padded_matmul.1} parent=35 // pred_check
          %p263 = pneg %p92
        $region42: #{_padded_matmul.1} parent=35 // pred_check_branch
          %265 = sbr.rel (%p263) target = $region44
        $region43: #{_padded_matmul.1} parent=35 // pred_region
          %267 = dma.done [#allocation7], 2048
        $region44: #{_padded_matmul.1} parent=35 // pred_fallthru
          _
        %s268 = sand.u32 %s51, 1
        %s269 = scalar_lea.sflag [#allocation4], %s268
        %s270 = sand.u32 %s51, 1
        %s271 = smul.addr %s270, 128
        %s272 = scalar_lea.vmem [#allocation3], %s271
        %p273 = pneg %p64
        %p274 = pneg %p61
        %p275 = pneg %p92
        %p276 = pneg %p89
        %p277 = scmp.lt.s32.totalorder %s28, 0
        %s278 = scalar_select %p277, %s28, 0
        %s279 = scalar_lea.vmem %s2, %s278
        %p280 = pneg %p118
        %p281 = pneg %p115
        %p282 = scmp.lt.s32.totalorder %s28, 0
        %s283 = scalar_select %p282, %s28, 0
        %s284 = scalar_lea.vmem %s3, %s283
        %p285 = pneg %p144
        %p286 = pneg %p141
        %p287 = pneg %p172
        %p288 = pneg %p169
        %s289 = sand.u32 %s159, 1
        %s290 = scalar_lea.sflag [#allocation5], %s289
        %s291 = sand.u32 %s159, 1
        %s292 = smul.addr %s291, 64
        %s293 = scalar_lea.vmem [#allocation8], %s292
        %s294 = smul.u32 16, %s27
        %s295 = smul.u32 2, %s29
        %s296 = smul.u32 32, %s29
        %p297 = scmp.lt.s32.totalorder %s28, 0
        %s298 = scalar_select %p297, %s28, 0
        %s299 = scalar_lea.vmem %s2, %s298
        %p300 = scmp.lt.s32.totalorder %s28, 0
        %s301 = scalar_select %p300, %s28, 0
        %s302 = scalar_lea.vmem %s3, %s301
        %s303 = smul.u32 16, %s27
        %p304 = scmp.eq.s32.totalorder %s29, 0
        // Predicated region
        $region45: #{_padded_matmul.1} parent=35 // pred_check
          %p305 = pneg %p304
        $region46: #{_padded_matmul.1} parent=35 // pred_check_branch
          %307 = sbr.rel (%p305) target = $region48
        $region47: #{_padded_matmul.1} parent=35 // pred_region
          %308 = vst [vmem:[#allocation2] sm:$0xff] 0.0
          %309 = vst [vmem:[#allocation2 + $0x8] sm:$0xff] 0.0
          %310 = vst [vmem:[#allocation2 + $0x10] sm:$0xff] 0.0
          %311 = vst [vmem:[#allocation2 + $0x18] sm:$0xff] 0.0
          %312 = vst [vmem:[#allocation2 + $0x20] sm:$0xff] 0.0
          %313 = vst [vmem:[#allocation2 + $0x28] sm:$0xff] 0.0
          %314 = vst [vmem:[#allocation2 + $0x30] sm:$0xff] 0.0
          %315 = vst [vmem:[#allocation2 + $0x38] sm:$0xff] 0.0
          %316 = vst [vmem:[#allocation2 + $0x40] sm:$0xff] 0.0
          %317 = vst [vmem:[#allocation2 + $0x48] sm:$0xff] 0.0
          %318 = vst [vmem:[#allocation2 + $0x50] sm:$0xff] 0.0
          %319 = vst [vmem:[#allocation2 + $0x58] sm:$0xff] 0.0
          %320 = vst [vmem:[#allocation2 + $0x60] sm:$0xff] 0.0
          %321 = vst [vmem:[#allocation2 + $0x68] sm:$0xff] 0.0
          %322 = vst [vmem:[#allocation2 + $0x70] sm:$0xff] 0.0
          %323 = vst [vmem:[#allocation2 + $0x78] sm:$0xff] 0.0
        $region48: #{_padded_matmul.1} parent=35 // pred_fallthru
          _
        %v324 = vld [vmem:[#allocation2] sm:$0xff]
        %v325 = vld [vmem:[#allocation2 + $0x8] sm:$0xff]
        %v326 = vld [vmem:[#allocation2 + $0x10] sm:$0xff]
        %v327 = vld [vmem:[#allocation2 + $0x18] sm:$0xff]
        %v328 = vld [vmem:[#allocation2 + $0x20] sm:$0xff]
        %v329 = vld [vmem:[#allocation2 + $0x28] sm:$0xff]
        %v330 = vld [vmem:[#allocation2 + $0x30] sm:$0xff]
        %v331 = vld [vmem:[#allocation2 + $0x38] sm:$0xff]
        %v332 = vld [vmem:[#allocation2 + $0x40] sm:$0xff]
        %v333 = vld [vmem:[#allocation2 + $0x48] sm:$0xff]
        %v334 = vld [vmem:[#allocation2 + $0x50] sm:$0xff]
        %v335 = vld [vmem:[#allocation2 + $0x58] sm:$0xff]
        %v336 = vld [vmem:[#allocation2 + $0x60] sm:$0xff]
        %v337 = vld [vmem:[#allocation2 + $0x68] sm:$0xff]
        %v338 = vld [vmem:[#allocation2 + $0x70] sm:$0xff]
        %v339 = vld [vmem:[#allocation2 + $0x78] sm:$0xff]
        %v340 = vld [vmem:[%s257] sm:$0xff]
        %v341 = vld [vmem:[%s257 + $0x8] sm:$0xff]
        %v342 = vld [vmem:[%s257 + $0x10] sm:$0xff]
        %v343 = vld [vmem:[%s257 + $0x18] sm:$0xff]
        %v344 = vld [vmem:[%s257 + $0x20] sm:$0xff]
        %v345 = vld [vmem:[%s257 + $0x28] sm:$0xff]
        %v346 = vld [vmem:[%s257 + $0x30] sm:$0xff]
        %v347 = vld [vmem:[%s257 + $0x38] sm:$0xff]
        %v348 = vld [vmem:[%s257 + $0x40] sm:$0xff]
        %v349 = vld [vmem:[%s257 + $0x48] sm:$0xff]
        %v350 = vld [vmem:[%s257 + $0x50] sm:$0xff]
        %v351 = vld [vmem:[%s257 + $0x58] sm:$0xff]
        %v352 = vld [vmem:[%s257 + $0x60] sm:$0xff]
        %v353 = vld [vmem:[%s257 + $0x68] sm:$0xff]
        %v354 = vld [vmem:[%s257 + $0x70] sm:$0xff]
        %v355 = vld [vmem:[%s257 + $0x78] sm:$0xff]
        %v356 = vld [vmem:[#allocation6] sm:$0xf]
        %v357 = vld [vmem:[#allocation6 + $0x4] sm:$0xf]
        %v358 = vld [vmem:[#allocation6 + $0x8] sm:$0xf]
        %v359 = vld [vmem:[#allocation6 + $0xc] sm:$0xf]
        %v360 = vld [vmem:[#allocation6 + $0x10] sm:$0xf]
        %v361 = vld [vmem:[#allocation6 + $0x14] sm:$0xf]
        %v362 = vld [vmem:[#allocation6 + $0x18] sm:$0xf]
        %v363 = vld [vmem:[#allocation6 + $0x1c] sm:$0xf]
        %v364 = vld [vmem:[#allocation6 + $0x20] sm:$0xf]
        %v365 = vld [vmem:[#allocation6 + $0x24] sm:$0xf]
        %v366 = vld [vmem:[#allocation6 + $0x28] sm:$0xf]
        %v367 = vld [vmem:[#allocation6 + $0x2c] sm:$0xf]
        %v368 = vld [vmem:[#allocation6 + $0x30] sm:$0xf]
        %v369 = vld [vmem:[#allocation6 + $0x34] sm:$0xf]
        %v370 = vld [vmem:[#allocation6 + $0x38] sm:$0xf]
        %v371 = vld [vmem:[#allocation6 + $0x3c] sm:$0xf]
        %v372 = vld [vmem:[#allocation6 + $0x40] sm:$0xf]
        %v373 = vld [vmem:[#allocation6 + $0x44] sm:$0xf]
        %v374 = vld [vmem:[#allocation6 + $0x48] sm:$0xf]
        %v375 = vld [vmem:[#allocation6 + $0x4c] sm:$0xf]
        %v376 = vld [vmem:[#allocation6 + $0x50] sm:$0xf]
        %v377 = vld [vmem:[#allocation6 + $0x54] sm:$0xf]
        %v378 = vld [vmem:[#allocation6 + $0x58] sm:$0xf]
        %v379 = vld [vmem:[#allocation6 + $0x5c] sm:$0xf]
        %v380 = vld [vmem:[#allocation6 + $0x60] sm:$0xf]
        %v381 = vld [vmem:[#allocation6 + $0x64] sm:$0xf]
        %v382 = vld [vmem:[#allocation6 + $0x68] sm:$0xf]
        %v383 = vld [vmem:[#allocation6 + $0x6c] sm:$0xf]
        %v384 = vld [vmem:[#allocation6 + $0x70] sm:$0xf]
        %v385 = vld [vmem:[#allocation6 + $0x74] sm:$0xf]
        %v386 = vld [vmem:[#allocation6 + $0x78] sm:$0xf]
        %v387 = vld [vmem:[#allocation6 + $0x7c] sm:$0xf]
        %v404 = vunpack.c.l.b16 %v340
        %v405 = vunpack.c.h.b16 %v340
        %v406 = vunpack.c.l.b16 %v341
        %v407 = vunpack.c.h.b16 %v341
        %v408 = vunpack.c.l.b16 %v342
        %v409 = vunpack.c.h.b16 %v342
        %v410 = vunpack.c.l.b16 %v343
        %v411 = vunpack.c.h.b16 %v343
        %v412 = vunpack.c.l.b16 %v344
        %v413 = vunpack.c.h.b16 %v344
        %v414 = vunpack.c.l.b16 %v345
        %v415 = vunpack.c.h.b16 %v345
        %v416 = vunpack.c.l.b16 %v346
        %v417 = vunpack.c.h.b16 %v346
        %v418 = vunpack.c.l.b16 %v347
        %v419 = vunpack.c.h.b16 %v347
        %v420 = vunpack.c.l.b16 %v348
        %v421 = vunpack.c.h.b16 %v348
        %v422 = vunpack.c.l.b16 %v349
        %v423 = vunpack.c.h.b16 %v349
        %v424 = vunpack.c.l.b16 %v350
        %v425 = vunpack.c.h.b16 %v350
        %v426 = vunpack.c.l.b16 %v351
        %v427 = vunpack.c.h.b16 %v351
        %v428 = vunpack.c.l.b16 %v352
        %v429 = vunpack.c.h.b16 %v352
        %v430 = vunpack.c.l.b16 %v353
        %v431 = vunpack.c.h.b16 %v353
        %v432 = vunpack.c.l.b16 %v354
        %v433 = vunpack.c.h.b16 %v354
        %v434 = vunpack.c.l.b16 %v355
        %v435 = vunpack.c.h.b16 %v355
        %v436 = vpack.c.b16 %v406, %v404
        %v437 = vpack.c.b16 %v407, %v405
        %v438 = vpack.c.b16 %v410, %v408
        %v439 = vpack.c.b16 %v411, %v409
        %v440 = vpack.c.b16 %v414, %v412
        %v441 = vpack.c.b16 %v415, %v413
        %v442 = vpack.c.b16 %v418, %v416
        %v443 = vpack.c.b16 %v419, %v417
        %v444 = vpack.c.b16 %v422, %v420
        %v445 = vpack.c.b16 %v423, %v421
        %v446 = vpack.c.b16 %v426, %v424
        %v447 = vpack.c.b16 %v427, %v425
        %v448 = vpack.c.b16 %v430, %v428
        %v449 = vpack.c.b16 %v431, %v429
        %v450 = vpack.c.b16 %v434, %v432
        %v451 = vpack.c.b16 %v435, %v433
        %v500 = vunpack.c.l.b16 %v356
        %v501 = vunpack.c.l.b16 %v357
        %v502 = vunpack.c.l.b16 %v358
        %v503 = vunpack.c.l.b16 %v359
        %v504 = vunpack.c.l.b16 %v360
        %v505 = vunpack.c.l.b16 %v361
        %v506 = vunpack.c.l.b16 %v362
        %v507 = vunpack.c.l.b16 %v363
        %v508 = vunpack.c.l.b16 %v364
        %v509 = vunpack.c.l.b16 %v365
        %v510 = vunpack.c.l.b16 %v366
        %v511 = vunpack.c.l.b16 %v367
        %v512 = vunpack.c.l.b16 %v368
        %v513 = vunpack.c.l.b16 %v369
        %v514 = vunpack.c.l.b16 %v370
        %v515 = vunpack.c.l.b16 %v371
        %v516 = vunpack.c.l.b16 %v372
        %v517 = vunpack.c.l.b16 %v373
        %v518 = vunpack.c.l.b16 %v374
        %v519 = vunpack.c.l.b16 %v375
        %v520 = vunpack.c.l.b16 %v376
        %v521 = vunpack.c.l.b16 %v377
        %v522 = vunpack.c.l.b16 %v378
        %v523 = vunpack.c.l.b16 %v379
        %v524 = vunpack.c.l.b16 %v380
        %v525 = vunpack.c.l.b16 %v381
        %v526 = vunpack.c.l.b16 %v382
        %v527 = vunpack.c.l.b16 %v383
        %v528 = vunpack.c.l.b16 %v384
        %v529 = vunpack.c.l.b16 %v385
        %v530 = vunpack.c.l.b16 %v386
        %v531 = vunpack.c.l.b16 %v387
        %v532 = vpack.c.b16 %v501, %v500
        %v533 = vpack.c.b16 %v503, %v502
        %v534 = vpack.c.b16 %v505, %v504
        %v535 = vpack.c.b16 %v507, %v506
        %v536 = vpack.c.b16 %v509, %v508
        %v537 = vpack.c.b16 %v511, %v510
        %v538 = vpack.c.b16 %v513, %v512
        %v539 = vpack.c.b16 %v515, %v514
        %v540 = vpack.c.b16 %v517, %v516
        %v541 = vpack.c.b16 %v519, %v518
        %v542 = vpack.c.b16 %v521, %v520
        %v543 = vpack.c.b16 %v523, %v522
        %v544 = vpack.c.b16 %v525, %v524
        %v545 = vpack.c.b16 %v527, %v526
        %v546 = vpack.c.b16 %v529, %v528
        %v547 = vpack.c.b16 %v531, %v530
        %564 = vmatpush.bf16.msra.mxu0 %v539
        %565 = vmatpush.bf16.msra.mxu0 %v538
        %566 = vmatpush.bf16.msra.mxu0 %v537
        %567 = vmatpush.bf16.msra.mxu0 %v536
        %568 = vmatpush.bf16.msra.mxu0 %v535
        %569 = vmatpush.bf16.msra.mxu0 %v534
        %570 = vmatpush.bf16.msra.mxu0 %v533
        %571 = vmatpush.bf16.msra.mxu0 %v532
        %572 = vmatmul.bf16.gmra.mxu0 %v436
        %v573 = vpop.f32.mrf.mxu0
        %v574 = vadd.f32 0.0, %v573
        %v575 = vpop.f32.mrf.mxu0
        %v576 = vadd.f32 0.0, %v575
        %577 = vmatmul.bf16.gmra.mxu0 %v438
        %v578 = vpop.f32.mrf.mxu0
        %v579 = vadd.f32 0.0, %v578
        %v580 = vpop.f32.mrf.mxu0
        %v581 = vadd.f32 0.0, %v580
        %582 = vmatmul.bf16.gmra.mxu0 %v440
        %v583 = vpop.f32.mrf.mxu0
        %v584 = vadd.f32 0.0, %v583
        %v585 = vpop.f32.mrf.mxu0
        %v586 = vadd.f32 0.0, %v585
        %587 = vmatmul.bf16.gmra.mxu0 %v442
        %v588 = vpop.f32.mrf.mxu0
        %v589 = vadd.f32 0.0, %v588
        %v590 = vpop.f32.mrf.mxu0
        %v591 = vadd.f32 0.0, %v590
        %592 = vmatmul.bf16.gmra.mxu0 %v444
        %v593 = vpop.f32.mrf.mxu0
        %v594 = vadd.f32 0.0, %v593
        %v595 = vpop.f32.mrf.mxu0
        %v596 = vadd.f32 0.0, %v595
        %597 = vmatmul.bf16.gmra.mxu0 %v446
        %v598 = vpop.f32.mrf.mxu0
        %v599 = vadd.f32 0.0, %v598
        %v600 = vpop.f32.mrf.mxu0
        %v601 = vadd.f32 0.0, %v600
        %602 = vmatmul.bf16.gmra.mxu0 %v448
        %v603 = vpop.f32.mrf.mxu0
        %v604 = vadd.f32 0.0, %v603
        %v605 = vpop.f32.mrf.mxu0
        %v606 = vadd.f32 0.0, %v605
        %607 = vmatmul.bf16.gmra.mxu0 %v450
        %v608 = vpop.f32.mrf.mxu0
        %v609 = vadd.f32 0.0, %v608
        %v610 = vpop.f32.mrf.mxu0
        %v611 = vadd.f32 0.0, %v610
        %612 = vdwg.mxu0
        %613 = vmatpush.bf16.msra.mxu0 %v547
        %614 = vmatpush.bf16.msra.mxu0 %v546
        %615 = vmatpush.bf16.msra.mxu0 %v545
        %616 = vmatpush.bf16.msra.mxu0 %v544
        %617 = vmatpush.bf16.msra.mxu0 %v543
        %618 = vmatpush.bf16.msra.mxu0 %v542
        %619 = vmatpush.bf16.msra.mxu0 %v541
        %620 = vmatpush.bf16.msra.mxu0 %v540
        %621 = vmatmul.bf16.gmra.mxu0 %v437
        %v622 = vpop.f32.mrf.mxu0
        %v623 = vadd.f32 %v574, %v622
        %v624 = vpop.f32.mrf.mxu0
        %v625 = vadd.f32 %v576, %v624
        %626 = vmatmul.bf16.gmra.mxu0 %v439
        %v627 = vpop.f32.mrf.mxu0
        %v628 = vadd.f32 %v579, %v627
        %v629 = vpop.f32.mrf.mxu0
        %v630 = vadd.f32 %v581, %v629
        %631 = vmatmul.bf16.gmra.mxu0 %v441
        %v632 = vpop.f32.mrf.mxu0
        %v633 = vadd.f32 %v584, %v632
        %v634 = vpop.f32.mrf.mxu0
        %v635 = vadd.f32 %v586, %v634
        %636 = vmatmul.bf16.gmra.mxu0 %v443
        %v637 = vpop.f32.mrf.mxu0
        %v638 = vadd.f32 %v589, %v637
        %v639 = vpop.f32.mrf.mxu0
        %v640 = vadd.f32 %v591, %v639
        %641 = vmatmul.bf16.gmra.mxu0 %v445
        %v642 = vpop.f32.mrf.mxu0
        %v643 = vadd.f32 %v594, %v642
        %v644 = vpop.f32.mrf.mxu0
        %v645 = vadd.f32 %v596, %v644
        %646 = vmatmul.bf16.gmra.mxu0 %v447
        %v647 = vpop.f32.mrf.mxu0
        %v648 = vadd.f32 %v599, %v647
        %v649 = vpop.f32.mrf.mxu0
        %v650 = vadd.f32 %v601, %v649
        %651 = vmatmul.bf16.gmra.mxu0 %v449
        %v652 = vpop.f32.mrf.mxu0
        %v653 = vadd.f32 %v604, %v652
        %v654 = vpop.f32.mrf.mxu0
        %v655 = vadd.f32 %v606, %v654
        %656 = vmatmul.bf16.gmra.mxu0 %v451
        %v657 = vpop.f32.mrf.mxu0
        %v658 = vadd.f32 %v609, %v657
        %v659 = vpop.f32.mrf.mxu0
        %v660 = vadd.f32 %v611, %v659
        %661 = vdwg.mxu0
        %v662 = vadd.f32 %v324, %v623
        %v663 = vadd.f32 %v325, %v625
        %v664 = vadd.f32 %v326, %v628
        %v665 = vadd.f32 %v327, %v630
        %v666 = vadd.f32 %v328, %v633
        %v667 = vadd.f32 %v329, %v635
        %v668 = vadd.f32 %v330, %v638
        %v669 = vadd.f32 %v331, %v640
        %v670 = vadd.f32 %v332, %v643
        %v671 = vadd.f32 %v333, %v645
        %v672 = vadd.f32 %v334, %v648
        %v673 = vadd.f32 %v335, %v650
        %v674 = vadd.f32 %v336, %v653
        %v675 = vadd.f32 %v337, %v655
        %v676 = vadd.f32 %v338, %v658
        %v677 = vadd.f32 %v339, %v660
        %678 = vst [vmem:[#allocation2] sm:$0xff] %v662
        %679 = vst [vmem:[#allocation2 + $0x8] sm:$0xff] %v663
        %680 = vst [vmem:[#allocation2 + $0x10] sm:$0xff] %v664
        %681 = vst [vmem:[#allocation2 + $0x18] sm:$0xff] %v665
        %682 = vst [vmem:[#allocation2 + $0x20] sm:$0xff] %v666
        %683 = vst [vmem:[#allocation2 + $0x28] sm:$0xff] %v667
        %684 = vst [vmem:[#allocation2 + $0x30] sm:$0xff] %v668
        %685 = vst [vmem:[#allocation2 + $0x38] sm:$0xff] %v669
        %686 = vst [vmem:[#allocation2 + $0x40] sm:$0xff] %v670
        %687 = vst [vmem:[#allocation2 + $0x48] sm:$0xff] %v671
        %688 = vst [vmem:[#allocation2 + $0x50] sm:$0xff] %v672
        %689 = vst [vmem:[#allocation2 + $0x58] sm:$0xff] %v673
        %690 = vst [vmem:[#allocation2 + $0x60] sm:$0xff] %v674
        %691 = vst [vmem:[#allocation2 + $0x68] sm:$0xff] %v675
        %692 = vst [vmem:[#allocation2 + $0x70] sm:$0xff] %v676
        %693 = vst [vmem:[#allocation2 + $0x78] sm:$0xff] %v677
        // Predicated region
        $region49: #{_padded_matmul.1} parent=35 // pred_check
          %p694 = pneg %p304
        $region50: #{_padded_matmul.1} parent=35 // pred_check_branch
          %696 = sbr.rel (%p694) target = $region52
        $region51: #{_padded_matmul.1} parent=35 // pred_region
          %v697 = vld [vmem:[#allocation2] sm:$0xff]
          %v698 = vld [vmem:[#allocation2 + $0x8] sm:$0xff]
          %v699 = vld [vmem:[#allocation2 + $0x10] sm:$0xff]
          %v700 = vld [vmem:[#allocation2 + $0x18] sm:$0xff]
          %v701 = vld [vmem:[#allocation2 + $0x20] sm:$0xff]
          %v702 = vld [vmem:[#allocation2 + $0x28] sm:$0xff]
          %v703 = vld [vmem:[#allocation2 + $0x30] sm:$0xff]
          %v704 = vld [vmem:[#allocation2 + $0x38] sm:$0xff]
          %v705 = vld [vmem:[#allocation2 + $0x40] sm:$0xff]
          %v706 = vld [vmem:[#allocation2 + $0x48] sm:$0xff]
          %v707 = vld [vmem:[#allocation2 + $0x50] sm:$0xff]
          %v708 = vld [vmem:[#allocation2 + $0x58] sm:$0xff]
          %v709 = vld [vmem:[#allocation2 + $0x60] sm:$0xff]
          %v710 = vld [vmem:[#allocation2 + $0x68] sm:$0xff]
          %v711 = vld [vmem:[#allocation2 + $0x70] sm:$0xff]
          %v712 = vld [vmem:[#allocation2 + $0x78] sm:$0xff]
          %v713 = vld [vmem:[%s299] sm:$0x1]
          %v715 = vperm.slane %v713, 0
          %v717 = vmul.f32 %v697, %v715
          %v718 = vmul.f32 %v698, %v715
          %v719 = vmul.f32 %v699, %v715
          %v720 = vmul.f32 %v700, %v715
          %v721 = vmul.f32 %v701, %v715
          %v722 = vmul.f32 %v702, %v715
          %v723 = vmul.f32 %v703, %v715
          %v724 = vmul.f32 %v704, %v715
          %v725 = vmul.f32 %v705, %v715
          %v726 = vmul.f32 %v706, %v715
          %v727 = vmul.f32 %v707, %v715
          %v728 = vmul.f32 %v708, %v715
          %v729 = vmul.f32 %v709, %v715
          %v730 = vmul.f32 %v710, %v715
          %v731 = vmul.f32 %v711, %v715
          %v732 = vmul.f32 %v712, %v715
          %v733 = vld [vmem:[%s302] sm:$0x1]
          %v735 = vperm.slane %v733, 0
          %v737 = vadd.f32 %v717, %v735
          %v738 = vadd.f32 %v718, %v735
          %v739 = vadd.f32 %v719, %v735
          %v740 = vadd.f32 %v720, %v735
          %v741 = vadd.f32 %v721, %v735
          %v742 = vadd.f32 %v722, %v735
          %v743 = vadd.f32 %v723, %v735
          %v744 = vadd.f32 %v724, %v735
          %v745 = vadd.f32 %v725, %v735
          %v746 = vadd.f32 %v726, %v735
          %v747 = vadd.f32 %v727, %v735
          %v748 = vadd.f32 %v728, %v735
          %v749 = vadd.f32 %v729, %v735
          %v750 = vadd.f32 %v730, %v735
          %v751 = vadd.f32 %v731, %v735
          %v752 = vadd.f32 %v732, %v735
          %v753 = vmax.f32 %v737, 0.0
          %v754 = vmax.f32 %v738, 0.0
          %v755 = vmax.f32 %v739, 0.0
          %v756 = vmax.f32 %v740, 0.0
          %v757 = vmax.f32 %v741, 0.0
          %v758 = vmax.f32 %v742, 0.0
          %v759 = vmax.f32 %v743, 0.0
          %v760 = vmax.f32 %v744, 0.0
          %v761 = vmax.f32 %v745, 0.0
          %v762 = vmax.f32 %v746, 0.0
          %v763 = vmax.f32 %v747, 0.0
          %v764 = vmax.f32 %v748, 0.0
          %v765 = vmax.f32 %v749, 0.0
          %v766 = vmax.f32 %v750, 0.0
          %v767 = vmax.f32 %v751, 0.0
          %v768 = vmax.f32 %v752, 0.0
          %v769 = vpack.c.bf16 %v753, %v753
          %v770 = vpack.c.bf16 %v754, %v754
          %v771 = vpack.c.bf16 %v755, %v755
          %v772 = vpack.c.bf16 %v756, %v756
          %v773 = vpack.c.bf16 %v757, %v757
          %v774 = vpack.c.bf16 %v758, %v758
          %v775 = vpack.c.bf16 %v759, %v759
          %v776 = vpack.c.bf16 %v760, %v760
          %v777 = vpack.c.bf16 %v761, %v761
          %v778 = vpack.c.bf16 %v762, %v762
          %v779 = vpack.c.bf16 %v763, %v763
          %v780 = vpack.c.bf16 %v764, %v764
          %v781 = vpack.c.bf16 %v765, %v765
          %v782 = vpack.c.bf16 %v766, %v766
          %v783 = vpack.c.bf16 %v767, %v767
          %v784 = vpack.c.bf16 %v768, %v768
          %785 = vst [vmem:[%s293] sm:$0xf] %v769
          %786 = vst [vmem:[%s293 + $0x4] sm:$0xf] %v770
          %787 = vst [vmem:[%s293 + $0x8] sm:$0xf] %v771
          %788 = vst [vmem:[%s293 + $0xc] sm:$0xf] %v772
          %789 = vst [vmem:[%s293 + $0x10] sm:$0xf] %v773
          %790 = vst [vmem:[%s293 + $0x14] sm:$0xf] %v774
          %791 = vst [vmem:[%s293 + $0x18] sm:$0xf] %v775
          %792 = vst [vmem:[%s293 + $0x1c] sm:$0xf] %v776
          %793 = vst [vmem:[%s293 + $0x20] sm:$0xf] %v777
          %794 = vst [vmem:[%s293 + $0x24] sm:$0xf] %v778
          %795 = vst [vmem:[%s293 + $0x28] sm:$0xf] %v779
          %796 = vst [vmem:[%s293 + $0x2c] sm:$0xf] %v780
          %797 = vst [vmem:[%s293 + $0x30] sm:$0xf] %v781
          %798 = vst [vmem:[%s293 + $0x34] sm:$0xf] %v782
          %799 = vst [vmem:[%s293 + $0x38] sm:$0xf] %v783
          %800 = vst [vmem:[%s293 + $0x3c] sm:$0xf] %v784
        $region52: #{_padded_matmul.1} parent=35 // pred_fallthru
          _
        %s801 = sand.u32 %s159, 1
        %s802 = scalar_lea.sflag [#allocation5], %s801
        %s803 = sand.u32 %s159, 1
        %s804 = smul.addr %s803, 64
        %s805 = scalar_lea.vmem [#allocation8], %s804
        // Predicated region
        $region53: #{_padded_matmul.1} parent=35 // pred_check
          %p806 = pneg %p169
        $region54: #{_padded_matmul.1} parent=35 // pred_check_branch
          %808 = sbr.rel (%p806) target = $region56
        $region55: #{_padded_matmul.1} parent=35 // pred_region
          %s809 = smul.u32 16, %s27
          %811 = vsyncadd %s802, 0
          %s812 = sadd.s32 %s28, %s809
          %s813 = smul.addr %s812, 4
          %s814 = scalar_lea.hbm %s4, %s813
          %s815 = sshll.u32 %s805, 4
          %s816 = int_to_ptr.vmem [resolvable:$true] %s815
          %s817 = sshll.u32 %s814, 4
          %s818 = int_to_ptr.hbm [resolvable:$true] %s817
          %823 = dma.vmem_to_hbm [thread:$0]  %s816, 1024, %s818, %s802, 64, 64, 4
        $region56: #{_padded_matmul.1} parent=35 // pred_fallthru
          _
      $region36: #{_padded_matmul.1} parent=5 // pred_fallthru
        _
      %p824 = scmp.le.s32.totalorder 2, %s17
      // Predicated region
      $region57: #{_padded_matmul.1} parent=5 // pred_check
        %p825 = pneg %p824
      $region58: #{_padded_matmul.1} parent=5 // pred_check_branch
        %827 = sbr.rel (%p825) target = $region60
      $region59: #{_padded_matmul.1} parent=5 // pred_region
        %s828 = ssub.s32 %s17, 2
        // Predicated region
        $region61: #{_padded_matmul.1} parent=59 // pred_check
          %p829 = pneg %p175
        $region62: #{_padded_matmul.1} parent=59 // pred_check_branch
          %831 = sbr.rel (%p829) target = $region64
        $region63: #{_padded_matmul.1} parent=59 // pred_region
          %s832 = sand.u32 %s160, 1
          %s833 = scalar_lea.sflag [#allocation5], %s832
          %s834 = sand.u32 %s160, 1
          %s835 = smul.addr %s834, 64
          %s836 = scalar_lea.vmem [#allocation8], %s835
          %838 = dma.done %s833, 1024
        $region64: #{_padded_matmul.1} parent=59 // pred_fallthru
          _
      $region60: #{_padded_matmul.1} parent=5 // pred_fallthru
        _
    $region6: #{_padded_matmul.1} parent=1 // loop_footer
      %s21 = sadd.s32 1, %s17
    $region7: #{_padded_matmul.1} parent=1 // loop_footer_branch
      %16 = sbr.rel target = $region3
    $region8: #{_padded_matmul.1} parent=1 // loop_exit
      _
    %839 = vsyncpa [#allocation4], 1
    %s840 = scalar_lea.sflag [#allocation4], 1
    %841 = vsyncpa %s840, 1
    %842 = vsyncpa [#allocation7], 1
    %843 = vsyncpa [#allocation5], 1
    %s844 = scalar_lea.sflag [#allocation5], 1
    %845 = vsyncpa %s844, 1

</llo_original>
